<compile_context>
chip_gen: v7x
topology: tpu7x:2x2x1
jax: 0.10.0
libtpu: 0.0.40
codegen_flags: <defaults>
</compile_context>

<pallas_src>
import jax
import jax.numpy as jnp
from jax.experimental import pallas as pl
from jax.experimental.pallas import tpu as pltpu


def _round_up(x: int, m: int) -> int:
    return ((x + m - 1) // m) * m


def _puremf_fwd_kernel(u_idx_ref, i_idx_ref, utab_ref, itab_ref, o_ref):
    # u_idx_ref / i_idx_ref : (TB, 1) int32  — row ids for this batch tile
    # utab_ref              : (Nu, D) f32   — full user table, VMEM resident
    # itab_ref              : (Ni, D) f32   — full item table, VMEM resident
    # o_ref                 : (1, TB) f32   — lane-dense sigmoid scores
    u_idx = u_idx_ref[...]                       # (TB, 1) int32
    i_idx = i_idx_ref[...]                       # (TB, 1) int32
    utab = utab_ref[...]                         # (Nu, D) f32
    itab = itab_ref[...]                         # (Ni, D) f32

    tb = u_idx.shape[0]
    nu = utab.shape[0]
    ni = itab.shape[0]

    # Fused embedding gather: one-hot @ table on the MXU.
    # (TB, 1) idx vs. lane-iota -> (TB, N) one-hot (exact in f32).
    u_oh = (u_idx == jax.lax.broadcasted_iota(jnp.int32, (tb, nu), 1)).astype(utab.dtype)
    i_oh = (i_idx == jax.lax.broadcasted_iota(jnp.int32, (tb, ni), 1)).astype(itab.dtype)
    u_emb = jnp.dot(u_oh, utab, preferred_element_type=jnp.float32)   # (TB, D)
    i_emb = jnp.dot(i_oh, itab, preferred_element_type=jnp.float32)   # (TB, D)

    # Per-row dot product: VPU multiply + XLU cross-lane reduce over D lanes.
    scores = jnp.sum(u_emb * i_emb, axis=1)                           # (TB,)

    # sigmoid = 1 / (1 + exp(-x)); exp on EUP, reciprocal instead of a divide.
    sig = pl.reciprocal(1.0 + jnp.exp(-scores))                       # (TB,)

    # Lane-dense store: (1, TB) row (TB is a multiple of 128 -> unmasked vst).
    o_ref[...] = sig[None, :].astype(o_ref.dtype)


def puremf_forward(user_table, item_table, users, items, *, max_block_b: int = 1024):
    """PureMF.forward(users, items) -> sigmoid scores of shape (B,)."""
    users = jnp.asarray(users).astype(jnp.int32)
    items = jnp.asarray(items).astype(jnp.int32)
    user_table = jnp.asarray(user_table, dtype=jnp.float32)
    item_table = jnp.asarray(item_table, dtype=jnp.float32)

    B = users.shape[0]
    Nu, D = user_table.shape
    Ni, Di = item_table.shape
    assert D == Di, "user/item latent dims must match"
    # Tables must fit resident in VMEM for the fused one-hot gather path.
    assert (Nu + Ni) * D * 4 <= 24 * 1024 * 1024, (
        "embedding tables too large for VMEM-resident gather; "
        "see TODO(synk) for the scalar-prefetch path")

    # Batch tile: multiple of 128 (lane-dense output), at most max_block_b,
    # which sits past the ~512-row HBM-roofline knee yet fits v7x VMEM.
    assert max_block_b % 128 == 0
    TB = min(_round_up(max(B, 1), 128), max_block_b)
    B_pad = pl.cdiv(B, TB) * TB
    n_tiles = B_pad // TB
    pad = B_pad - B

    # Index arrays as (B_pad, 1) so the one-hot compare broadcasts along lanes.
    # Zero padding indexes row 0 (valid); padded scores are sliced off below.
    u_idx = jnp.pad(users, (0, pad)).reshape(B_pad, 1)
    i_idx = jnp.pad(items, (0, pad)).reshape(B_pad, 1)

    cost = pl.CostEstimate(
        flops=2 * B_pad * D * (Nu + Ni + 1),          # one-hot gathers + dot product
        transcendentals=B_pad,                        # exp per score
        bytes_accessed=(Nu + Ni) * D * 4 + 2 * B_pad * 4 + B_pad * 4,
    )

    out = pl.pallas_call(
        _puremf_fwd_kernel,
        out_shape=jax.ShapeDtypeStruct((n_tiles, TB), jnp.float32),
        grid=(n_tiles,),
        in_specs=[
            pl.BlockSpec((TB, 1), lambda i: (i, 0)),    # user ids, tiled over batch
            pl.BlockSpec((TB, 1), lambda i: (i, 0)),    # item ids, tiled over batch
            pl.BlockSpec((Nu, D), lambda i: (0, 0)),    # user table, VMEM resident
            pl.BlockSpec((Ni, D), lambda i: (0, 0)),    # item table, VMEM resident
        ],
        out_specs=pl.BlockSpec((1, TB), lambda i: (i, 0)),  # lane-dense scores
        compiler_params=pltpu.CompilerParams(
            dimension_semantics=("parallel",),          # shard batch tiles across TCs (v7x)
            vmem_limit_bytes=64 * 1024 * 1024,          # headroom over the 16/32 MiB defaults
        ),
        cost_estimate=cost,
    )(u_idx, i_idx, user_table, item_table)

    return out.reshape(B_pad)[:B]                       # (B,)


if __name__ == "__main__":
    # Small deterministic setup consistent with PureMF.__init__:
    # N(0,1)-initialized user/item embedding tables with latent_dim columns.
    num_users = 16
    num_items = 24
    latent_dim = 32
    batch = 8

    key = jax.random.PRNGKey(0)
    k_u, k_i, k_uid, k_iid = jax.random.split(key, 4)

    user_table = jax.random.normal(k_u, (num_users, latent_dim), dtype=jnp.float32)
    item_table = jax.random.normal(k_i, (num_items, latent_dim), dtype=jnp.float32)

    users = jax.random.randint(k_uid, (batch,), 0, num_users, dtype=jnp.int32)
    items = jax.random.randint(k_iid, (batch,), 0, num_items, dtype=jnp.int32)

    scores = puremf_forward(user_table, item_table, users, items)
    scores = jax.block_until_ready(scores)

    # Pure-JAX reference check.
    ref = jax.nn.sigmoid(jnp.sum(user_table[users] * item_table[items], axis=1))
    assert scores.shape == (batch,)
    assert jnp.allclose(scores, ref, atol=1e-5, rtol=1e-5)

    print("KERNEL_OK")
</pallas_src>

<mosaic_0001>
module attributes {stable_mosaic.version = 11 : i64} {
  func.func @_puremf_fwd_kernel(%arg0: i32, %arg1: memref<128x1xi32, #tpu.memory_space<vmem>>, %arg2: memref<128x1xi32, #tpu.memory_space<vmem>>, %arg3: memref<16x32xf32, #tpu.memory_space<vmem>>, %arg4: memref<24x32xf32, #tpu.memory_space<vmem>>, %arg5: memref<1x128xf32, #tpu.memory_space<vmem>>) attributes {dimension_semantics = [#tpu.dimension_semantics<parallel>], iteration_bounds = array<i64: 1>, scalar_prefetch = 0 : i64, scratch_operands = 0 : i64, tpu.core_type = #tpu.core_type<tc>, window_params = [{transform_indices = @transform_0, window_bounds = array<i64: 128, 1>}, {transform_indices = @transform_1, window_bounds = array<i64: 128, 1>}, {pipeline_mode = #tpu.pipeline_mode<synchronous>, transform_indices = @transform_2, window_bounds = array<i64: 16, 32>}, {pipeline_mode = #tpu.pipeline_mode<synchronous>, transform_indices = @transform_3, window_bounds = array<i64: 24, 32>}, {transform_indices = @transform_4, window_bounds = array<i64: 1, 128>}]} {
    %c0 = arith.constant 0 : index
    %c0_0 = arith.constant 0 : index
    %0 = vector.load %arg1[%c0, %c0_0] : memref<128x1xi32, #tpu.memory_space<vmem>>, vector<128x1xi32>
    %c0_1 = arith.constant 0 : index
    %c0_2 = arith.constant 0 : index
    %1 = vector.load %arg2[%c0_1, %c0_2] : memref<128x1xi32, #tpu.memory_space<vmem>>, vector<128x1xi32>
    %c0_3 = arith.constant 0 : index
    %c0_4 = arith.constant 0 : index
    %2 = vector.load %arg3[%c0_3, %c0_4] : memref<16x32xf32, #tpu.memory_space<vmem>>, vector<16x32xf32>
    %c0_5 = arith.constant 0 : index
    %c0_6 = arith.constant 0 : index
    %3 = vector.load %arg4[%c0_5, %c0_6] : memref<24x32xf32, #tpu.memory_space<vmem>>, vector<24x32xf32>
    %4 = tpu.iota {dimensions = array<i32: 1>} : vector<128x16xi32>
    %5 = vector.broadcast %0 : vector<128x1xi32> to vector<128x16xi32>
    %6 = arith.cmpi eq, %5, %4 : vector<128x16xi32>
    %7 = arith.extui %6 : vector<128x16xi1> to vector<128x16xi32>
    %8 = arith.sitofp %7 : vector<128x16xi32> to vector<128x16xf32>
    %9 = tpu.iota {dimensions = array<i32: 1>} : vector<128x24xi32>
    %10 = vector.broadcast %1 : vector<128x1xi32> to vector<128x24xi32>
    %11 = arith.cmpi eq, %10, %9 : vector<128x24xi32>
    %12 = arith.extui %11 : vector<128x24xi1> to vector<128x24xi32>
    %13 = arith.sitofp %12 : vector<128x24xi32> to vector<128x24xf32>
    %cst = arith.constant dense<0.000000e+00> : vector<128x32xf32>
    %14 = tpu.matmul %8, %2, %cst {dimension_numbers = #tpu.dot_dimension_numbers<[1], [0], [0], [1], [0, 0, 1, 1], [], []>} : vector<128x16xf32>, vector<16x32xf32>, vector<128x32xf32> -> vector<128x32xf32>
    %cst_7 = arith.constant dense<0.000000e+00> : vector<128x32xf32>
    %15 = tpu.matmul %13, %3, %cst_7 {dimension_numbers = #tpu.dot_dimension_numbers<[1], [0], [0], [1], [0, 0, 1, 1], [], []>} : vector<128x24xf32>, vector<24x32xf32>, vector<128x32xf32> -> vector<128x32xf32>
    %16 = arith.mulf %14, %15 : vector<128x32xf32>
    %cst_8 = arith.constant dense<0.000000e+00> : vector<128xf32>
    %17 = vector.multi_reduction <add>, %16, %cst_8 [1] : vector<128x32xf32> to vector<128xf32>
    %cst_9 = arith.constant 0.000000e+00 : f32
    %18 = vector.broadcast %cst_9 : f32 to vector<128xf32>
    %19 = arith.subf %18, %17 : vector<128xf32>
    %20 = math.exp %19 : vector<128xf32>
    %cst_10 = arith.constant 1.000000e+00 : f32
    %21 = vector.broadcast %cst_10 : f32 to vector<128xf32>
    %22 = arith.addf %21, %20 : vector<128xf32>
    %23 = tpu.reciprocal %22 : vector<128xf32> -> vector<128xf32>
    %24 = vector.shape_cast %23 : vector<128xf32> to vector<1x128xf32>
    %c0_11 = arith.constant 0 : index
    %c0_12 = arith.constant 0 : index
    %25 = vector.load %arg5[%c0_11, %c0_12] : memref<1x128xf32, #tpu.memory_space<vmem>>, vector<1x128xf32>
    tpu.vector_store %arg5[%c0_11, %c0_12], %24 {strides = array<i32>} : memref<1x128xf32, #tpu.memory_space<vmem>>, vector<1x128xf32>,
    return
  }
  func.func @transform_0(%arg0: i32) -> (i32, i32) {
    %c0_i32 = arith.constant 0 : i32
    %c0_i32_0 = arith.constant 0 : i32
    return %arg0, %c0_i32 : i32, i32
  }
  func.func @transform_1(%arg0: i32) -> (i32, i32) {
    %c0_i32 = arith.constant 0 : i32
    %c0_i32_0 = arith.constant 0 : i32
    return %arg0, %c0_i32 : i32, i32
  }
  func.func @transform_2(%arg0: i32) -> (i32, i32) {
    %c0_i32 = arith.constant 0 : i32
    %c0_i32_0 = arith.constant 0 : i32
    %c0_i32_1 = arith.constant 0 : i32
    return %c0_i32, %c0_i32_0 : i32, i32
  }
  func.func @transform_3(%arg0: i32) -> (i32, i32) {
    %c0_i32 = arith.constant 0 : i32
    %c0_i32_0 = arith.constant 0 : i32
    %c0_i32_1 = arith.constant 0 : i32
    return %c0_i32, %c0_i32_0 : i32, i32
  }
  func.func @transform_4(%arg0: i32) -> (i32, i32) {
    %c0_i32 = arith.constant 0 : i32
    %c0_i32_0 = arith.constant 0 : i32
    return %arg0, %c0_i32 : i32, i32
  }
}

</mosaic_0001>

<llo_original>
// kernel: tpu_custom_call.1
$region0: #{tpu_custom_call.1}
  #allocation0 [shape = 'u32[]', space=smem, size = 0x4, offset = 0x4, fixed_abs, tag = 'smem constant byte address 0x4 - core index']
  #allocation1 [shape = 'u32[144,128]{1,0:T(1,128)}', space=vmem, size = 0x12000, scoped, tag = 'internal scratch']
  %s0 = inlined_call_operand.hbm [shape: s32[128,1], index: 0, kind: input, shape index: {}]
  %s1 = inlined_call_operand.hbm [shape: s32[128,1], index: 1, kind: input, shape index: {}]
  %s2 = inlined_call_operand.hbm [shape: f32[16,32], index: 2, kind: input, shape index: {}]
  %s3 = inlined_call_operand.hbm [shape: f32[24,32], index: 3, kind: input, shape index: {}]
  %s4 = inlined_call_operand.hbm [shape: f32[1,128], index: 4, kind: output, shape index: {}]
  %s5 = sld [smem:[#allocation0]]
  $region42: #{tpu_custom_call.1} parent=0
    _
  %s7 = ssub.s32 1, %s5
  %s8 = scalar_select 0, %s7, %s5
  $region1: #{tpu_custom_call.1} parent=0
    #allocation2 [shape = 'u8[65536]{0}', space=vmem, size = 0x10000, scoped, tag = 'input window, operand 0, single buffered']
    #allocation3 [shape = 's32[1]{0}', space=sflag, size = 0x4, scoped, tag = 'scoped memory for tpu_custom_call.1']
    #allocation4 [shape = 's32[1]{0}', space=sflag, size = 0x4, scoped, tag = 'scoped memory for tpu_custom_call.1']
    #allocation5 [shape = 'u8[65536]{0}', space=vmem, size = 0x10000, scoped, tag = 'input window, operand 1, single buffered']
    #allocation6 [shape = 's32[1]{0}', space=sflag, size = 0x4, scoped, tag = 'scoped memory for tpu_custom_call.1']
    #allocation7 [shape = 'u8[8192]{0}', space=vmem, size = 0x2000, scoped, tag = 'input window, operand 2, single buffered']
    #allocation8 [shape = 'u8[12288]{0}', space=vmem, size = 0x3000, scoped, tag = 'input window, operand 3, single buffered']
    #allocation9 [shape = 's32[1]{0}', space=sflag, size = 0x4, scoped, tag = 'scoped memory for tpu_custom_call.1']
    #allocation10 [shape = 'u8[512]{0}', space=vmem, size = 0x400, scoped, tag = 'output window, operand 0, single buffered']
    %9 = vsyncpa [#allocation3], 0
    %10 = vsyncpa [#allocation6], 0
    %11 = vsyncpa [#allocation9], 0
    %12 = vsyncpa [#allocation4], 0
    // Predicated region
    $region2: #{tpu_custom_call.1} parent=1 // pred_check
      _
    $region3: #{tpu_custom_call.1} parent=1 // pred_check_branch
      %14 = sbr.rel (0) target = $region5
    $region4: #{tpu_custom_call.1} parent=1 // pred_region
      %s16 = ssub.s32 2048, 2048
      %17 = vsyncadd [#allocation3], %s16
      %s18 = sshll.u32 [#allocation2], 4
      %s19 = int_to_ptr.vmem [resolvable:$true] %s18
      %24 = dma.hbm_to_vmem [thread:$0]  %s0, 2048, %s19, [#allocation3], 128, 128, 8
    $region5: #{tpu_custom_call.1} parent=1 // pred_fallthru
      _
    // Predicated region
    $region6: #{tpu_custom_call.1} parent=1 // pred_check
      _
    $region7: #{tpu_custom_call.1} parent=1 // pred_check_branch
      %26 = sbr.rel (0) target = $region9
    $region8: #{tpu_custom_call.1} parent=1 // pred_region
      %s28 = ssub.s32 2048, 2048
      %29 = vsyncadd [#allocation6], %s28
      %s30 = sshll.u32 [#allocation5], 4
      %s31 = int_to_ptr.vmem [resolvable:$true] %s30
      %36 = dma.hbm_to_vmem [thread:$0]  %s1, 2048, %s31, [#allocation6], 128, 128, 8
    $region9: #{tpu_custom_call.1} parent=1 // pred_fallthru
      _
    // Predicated region
    $region10: #{tpu_custom_call.1} parent=1 // pred_check
      _
    $region11: #{tpu_custom_call.1} parent=1 // pred_check_branch
      %38 = sbr.rel (0) target = $region13
    $region12: #{tpu_custom_call.1} parent=1 // pred_region
      %s40 = ssub.s32 256, 256
      %41 = vsyncadd [#allocation6], %s40
      %s42 = sshll.u32 [#allocation7], 4
      %s43 = int_to_ptr.vmem [resolvable:$true] %s42
      %48 = dma.hbm_to_vmem [thread:$0]  %s2, 256, %s43, [#allocation6], 128, 128, 8
    $region13: #{tpu_custom_call.1} parent=1 // pred_fallthru
      _
    // Predicated region
    $region14: #{tpu_custom_call.1} parent=1 // pred_check
      _
    $region15: #{tpu_custom_call.1} parent=1 // pred_check_branch
      %50 = sbr.rel (0) target = $region17
    $region16: #{tpu_custom_call.1} parent=1 // pred_region
      %s52 = ssub.s32 384, 384
      %53 = vsyncadd [#allocation9], %s52
      %s54 = sshll.u32 [#allocation8], 4
      %s55 = int_to_ptr.vmem [resolvable:$true] %s54
      %60 = dma.hbm_to_vmem [thread:$0]  %s3, 384, %s55, [#allocation9], 128, 128, 8
    $region17: #{tpu_custom_call.1} parent=1 // pred_fallthru
      _
    // Predicated region
    $region18: #{tpu_custom_call.1} parent=1 // pred_check
      _
    $region19: #{tpu_custom_call.1} parent=1 // pred_check_branch
      %62 = sbr.rel (0) target = $region21
    $region20: #{tpu_custom_call.1} parent=1 // pred_region
      %63 = dma.done [#allocation3], 2048
    $region21: #{tpu_custom_call.1} parent=1 // pred_fallthru
      _
    // Predicated region
    $region22: #{tpu_custom_call.1} parent=1 // pred_check
      _
    $region23: #{tpu_custom_call.1} parent=1 // pred_check_branch
      %65 = sbr.rel (0) target = $region25
    $region24: #{tpu_custom_call.1} parent=1 // pred_region
      %66 = dma.done [#allocation6], 2048
    $region25: #{tpu_custom_call.1} parent=1 // pred_fallthru
      _
    // Predicated region
    $region26: #{tpu_custom_call.1} parent=1 // pred_check
      _
    $region27: #{tpu_custom_call.1} parent=1 // pred_check_branch
      %68 = sbr.rel (0) target = $region29
    $region28: #{tpu_custom_call.1} parent=1 // pred_region
      %69 = dma.done [#allocation6], 256
    $region29: #{tpu_custom_call.1} parent=1 // pred_fallthru
      _
    // Predicated region
    $region30: #{tpu_custom_call.1} parent=1 // pred_check
      _
    $region31: #{tpu_custom_call.1} parent=1 // pred_check_branch
      %71 = sbr.rel (0) target = $region33
    $region32: #{tpu_custom_call.1} parent=1 // pred_region
      %72 = dma.done [#allocation9], 384
    $region33: #{tpu_custom_call.1} parent=1 // pred_fallthru
      _
    %v73 = vld [vmem:[#allocation2] sm:$0xff]
    %v74 = vld [vmem:[#allocation2 + $0x8] sm:$0xff]
    %v75 = vld [vmem:[#allocation2 + $0x10] sm:$0xff]
    %v76 = vld [vmem:[#allocation2 + $0x18] sm:$0xff]
    %v77 = vld [vmem:[#allocation2 + $0x20] sm:$0xff]
    %v78 = vld [vmem:[#allocation2 + $0x28] sm:$0xff]
    %v79 = vld [vmem:[#allocation2 + $0x30] sm:$0xff]
    %v80 = vld [vmem:[#allocation2 + $0x38] sm:$0xff]
    %v81 = vld [vmem:[#allocation2 + $0x40] sm:$0xff]
    %v82 = vld [vmem:[#allocation2 + $0x48] sm:$0xff]
    %v83 = vld [vmem:[#allocation2 + $0x50] sm:$0xff]
    %v84 = vld [vmem:[#allocation2 + $0x58] sm:$0xff]
    %v85 = vld [vmem:[#allocation2 + $0x60] sm:$0xff]
    %v86 = vld [vmem:[#allocation2 + $0x68] sm:$0xff]
    %v87 = vld [vmem:[#allocation2 + $0x70] sm:$0xff]
    %v88 = vld [vmem:[#allocation2 + $0x78] sm:$0xff]
    %v89 = vld [vmem:[#allocation5] sm:$0xff]
    %v90 = vld [vmem:[#allocation5 + $0x8] sm:$0xff]
    %v91 = vld [vmem:[#allocation5 + $0x10] sm:$0xff]
    %v92 = vld [vmem:[#allocation5 + $0x18] sm:$0xff]
    %v93 = vld [vmem:[#allocation5 + $0x20] sm:$0xff]
    %v94 = vld [vmem:[#allocation5 + $0x28] sm:$0xff]
    %v95 = vld [vmem:[#allocation5 + $0x30] sm:$0xff]
    %v96 = vld [vmem:[#allocation5 + $0x38] sm:$0xff]
    %v97 = vld [vmem:[#allocation5 + $0x40] sm:$0xff]
    %v98 = vld [vmem:[#allocation5 + $0x48] sm:$0xff]
    %v99 = vld [vmem:[#allocation5 + $0x50] sm:$0xff]
    %v100 = vld [vmem:[#allocation5 + $0x58] sm:$0xff]
    %v101 = vld [vmem:[#allocation5 + $0x60] sm:$0xff]
    %v102 = vld [vmem:[#allocation5 + $0x68] sm:$0xff]
    %v103 = vld [vmem:[#allocation5 + $0x70] sm:$0xff]
    %v104 = vld [vmem:[#allocation5 + $0x78] sm:$0xff]
    %v105 = vld [vmem:[#allocation7] sm:$0xff]
    %v106 = vld [vmem:[#allocation7 + $0x8] sm:$0xff]
    %v107 = vld [vmem:[#allocation8] sm:$0xff]
    %v108 = vld [vmem:[#allocation8 + $0x8] sm:$0xff]
    %v109 = vld [vmem:[#allocation8 + $0x10] sm:$0xff]
    %v110 = vlaneseq
    %v111 = vand.u32 %v110, 127
    %112 = vset.pattern.permute.xlu0 0
    %113 = vperm.xlu0 %112, %v73
    %v114 = vpop.permute.xlu0 %113
    %115 = vset.pattern.permute.xlu0 0
    %116 = vperm.xlu0 %115, %v74
    %v117 = vpop.permute.xlu0 %116
    %118 = vset.pattern.permute.xlu0 0
    %119 = vperm.xlu0 %118, %v75
    %v120 = vpop.permute.xlu0 %119
    %121 = vset.pattern.permute.xlu0 0
    %122 = vperm.xlu0 %121, %v76
    %v123 = vpop.permute.xlu0 %122
    %124 = vset.pattern.permute.xlu0 0
    %125 = vperm.xlu0 %124, %v77
    %v126 = vpop.permute.xlu0 %125
    %127 = vset.pattern.permute.xlu0 0
    %128 = vperm.xlu0 %127, %v78
    %v129 = vpop.permute.xlu0 %128
    %130 = vset.pattern.permute.xlu0 0
    %131 = vperm.xlu0 %130, %v79
    %v132 = vpop.permute.xlu0 %131
    %133 = vset.pattern.permute.xlu0 0
    %134 = vperm.xlu0 %133, %v80
    %v135 = vpop.permute.xlu0 %134
    %136 = vset.pattern.permute.xlu0 0
    %137 = vperm.xlu0 %136, %v81
    %v138 = vpop.permute.xlu0 %137
    %139 = vset.pattern.permute.xlu0 0
    %140 = vperm.xlu0 %139, %v82
    %v141 = vpop.permute.xlu0 %140
    %142 = vset.pattern.permute.xlu0 0
    %143 = vperm.xlu0 %142, %v83
    %v144 = vpop.permute.xlu0 %143
    %145 = vset.pattern.permute.xlu0 0
    %146 = vperm.xlu0 %145, %v84
    %v147 = vpop.permute.xlu0 %146
    %148 = vset.pattern.permute.xlu0 0
    %149 = vperm.xlu0 %148, %v85
    %v150 = vpop.permute.xlu0 %149
    %151 = vset.pattern.permute.xlu0 0
    %152 = vperm.xlu0 %151, %v86
    %v153 = vpop.permute.xlu0 %152
    %154 = vset.pattern.permute.xlu0 0
    %155 = vperm.xlu0 %154, %v87
    %v156 = vpop.permute.xlu0 %155
    %157 = vset.pattern.permute.xlu0 0
    %158 = vperm.xlu0 %157, %v88
    %v159 = vpop.permute.xlu0 %158
    %vm160 = vcmp.eq.s32.totalorder %v114, %v111
    %vm161 = vcmp.eq.s32.totalorder %v117, %v111
    %vm162 = vcmp.eq.s32.totalorder %v120, %v111
    %vm163 = vcmp.eq.s32.totalorder %v123, %v111
    %vm164 = vcmp.eq.s32.totalorder %v126, %v111
    %vm165 = vcmp.eq.s32.totalorder %v129, %v111
    %vm166 = vcmp.eq.s32.totalorder %v132, %v111
    %vm167 = vcmp.eq.s32.totalorder %v135, %v111
    %vm168 = vcmp.eq.s32.totalorder %v138, %v111
    %vm169 = vcmp.eq.s32.totalorder %v141, %v111
    %vm170 = vcmp.eq.s32.totalorder %v144, %v111
    %vm171 = vcmp.eq.s32.totalorder %v147, %v111
    %vm172 = vcmp.eq.s32.totalorder %v150, %v111
    %vm173 = vcmp.eq.s32.totalorder %v153, %v111
    %vm174 = vcmp.eq.s32.totalorder %v156, %v111
    %vm175 = vcmp.eq.s32.totalorder %v159, %v111
    %v176 = vsel %vm160, 1, 0
    %v177 = vsel %vm161, 1, 0
    %v178 = vsel %vm162, 1, 0
    %v179 = vsel %vm163, 1, 0
    %v180 = vsel %vm164, 1, 0
    %v181 = vsel %vm165, 1, 0
    %v182 = vsel %vm166, 1, 0
    %v183 = vsel %vm167, 1, 0
    %v184 = vsel %vm168, 1, 0
    %v185 = vsel %vm169, 1, 0
    %v186 = vsel %vm170, 1, 0
    %v187 = vsel %vm171, 1, 0
    %v188 = vsel %vm172, 1, 0
    %v189 = vsel %vm173, 1, 0
    %v190 = vsel %vm174, 1, 0
    %v191 = vsel %vm175, 1, 0
    %v192 = vcvt.s32.f32 %v176
    %v193 = vcvt.s32.f32 %v177
    %v194 = vcvt.s32.f32 %v178
    %v195 = vcvt.s32.f32 %v179
    %v196 = vcvt.s32.f32 %v180
    %v197 = vcvt.s32.f32 %v181
    %v198 = vcvt.s32.f32 %v182
    %v199 = vcvt.s32.f32 %v183
    %v200 = vcvt.s32.f32 %v184
    %v201 = vcvt.s32.f32 %v185
    %v202 = vcvt.s32.f32 %v186
    %v203 = vcvt.s32.f32 %v187
    %v204 = vcvt.s32.f32 %v188
    %v205 = vcvt.s32.f32 %v189
    %v206 = vcvt.s32.f32 %v190
    %v207 = vcvt.s32.f32 %v191
    %208 = vset.pattern.permute.xlu0 0
    %209 = vperm.xlu0 %208, %v89
    %v210 = vpop.permute.xlu0 %209
    %211 = vset.pattern.permute.xlu0 0
    %212 = vperm.xlu0 %211, %v90
    %v213 = vpop.permute.xlu0 %212
    %214 = vset.pattern.permute.xlu0 0
    %215 = vperm.xlu0 %214, %v91
    %v216 = vpop.permute.xlu0 %215
    %217 = vset.pattern.permute.xlu0 0
    %218 = vperm.xlu0 %217, %v92
    %v219 = vpop.permute.xlu0 %218
    %220 = vset.pattern.permute.xlu0 0
    %221 = vperm.xlu0 %220, %v93
    %v222 = vpop.permute.xlu0 %221
    %223 = vset.pattern.permute.xlu0 0
    %224 = vperm.xlu0 %223, %v94
    %v225 = vpop.permute.xlu0 %224
    %226 = vset.pattern.permute.xlu0 0
    %227 = vperm.xlu0 %226, %v95
    %v228 = vpop.permute.xlu0 %227
    %229 = vset.pattern.permute.xlu0 0
    %230 = vperm.xlu0 %229, %v96
    %v231 = vpop.permute.xlu0 %230
    %232 = vset.pattern.permute.xlu0 0
    %233 = vperm.xlu0 %232, %v97
    %v234 = vpop.permute.xlu0 %233
    %235 = vset.pattern.permute.xlu0 0
    %236 = vperm.xlu0 %235, %v98
    %v237 = vpop.permute.xlu0 %236
    %238 = vset.pattern.permute.xlu0 0
    %239 = vperm.xlu0 %238, %v99
    %v240 = vpop.permute.xlu0 %239
    %241 = vset.pattern.permute.xlu0 0
    %242 = vperm.xlu0 %241, %v100
    %v243 = vpop.permute.xlu0 %242
    %244 = vset.pattern.permute.xlu0 0
    %245 = vperm.xlu0 %244, %v101
    %v246 = vpop.permute.xlu0 %245
    %247 = vset.pattern.permute.xlu0 0
    %248 = vperm.xlu0 %247, %v102
    %v249 = vpop.permute.xlu0 %248
    %250 = vset.pattern.permute.xlu0 0
    %251 = vperm.xlu0 %250, %v103
    %v252 = vpop.permute.xlu0 %251
    %253 = vset.pattern.permute.xlu0 0
    %254 = vperm.xlu0 %253, %v104
    %v255 = vpop.permute.xlu0 %254
    %vm256 = vcmp.eq.s32.totalorder %v210, %v111
    %vm257 = vcmp.eq.s32.totalorder %v213, %v111
    %vm258 = vcmp.eq.s32.totalorder %v216, %v111
    %vm259 = vcmp.eq.s32.totalorder %v219, %v111
    %vm260 = vcmp.eq.s32.totalorder %v222, %v111
    %vm261 = vcmp.eq.s32.totalorder %v225, %v111
    %vm262 = vcmp.eq.s32.totalorder %v228, %v111
    %vm263 = vcmp.eq.s32.totalorder %v231, %v111
    %vm264 = vcmp.eq.s32.totalorder %v234, %v111
    %vm265 = vcmp.eq.s32.totalorder %v237, %v111
    %vm266 = vcmp.eq.s32.totalorder %v240, %v111
    %vm267 = vcmp.eq.s32.totalorder %v243, %v111
    %vm268 = vcmp.eq.s32.totalorder %v246, %v111
    %vm269 = vcmp.eq.s32.totalorder %v249, %v111
    %vm270 = vcmp.eq.s32.totalorder %v252, %v111
    %vm271 = vcmp.eq.s32.totalorder %v255, %v111
    %v272 = vsel %vm256, 1, 0
    %v273 = vsel %vm257, 1, 0
    %v274 = vsel %vm258, 1, 0
    %v275 = vsel %vm259, 1, 0
    %v276 = vsel %vm260, 1, 0
    %v277 = vsel %vm261, 1, 0
    %v278 = vsel %vm262, 1, 0
    %v279 = vsel %vm263, 1, 0
    %v280 = vsel %vm264, 1, 0
    %v281 = vsel %vm265, 1, 0
    %v282 = vsel %vm266, 1, 0
    %v283 = vsel %vm267, 1, 0
    %v284 = vsel %vm268, 1, 0
    %v285 = vsel %vm269, 1, 0
    %v286 = vsel %vm270, 1, 0
    %v287 = vsel %vm271, 1, 0
    %v288 = vcvt.s32.f32 %v272
    %v289 = vcvt.s32.f32 %v273
    %v290 = vcvt.s32.f32 %v274
    %v291 = vcvt.s32.f32 %v275
    %v292 = vcvt.s32.f32 %v276
    %v293 = vcvt.s32.f32 %v277
    %v294 = vcvt.s32.f32 %v278
    %v295 = vcvt.s32.f32 %v279
    %v296 = vcvt.s32.f32 %v280
    %v297 = vcvt.s32.f32 %v281
    %v298 = vcvt.s32.f32 %v282
    %v299 = vcvt.s32.f32 %v283
    %v300 = vcvt.s32.f32 %v284
    %v301 = vcvt.s32.f32 %v285
    %v302 = vcvt.s32.f32 %v286
    %v303 = vcvt.s32.f32 %v287
    %vm304 = vcmask 130048
    %v306 = vsel %vm304, %v192, 0
    %v309 = vsel %vm304, %v193, 0
    %v312 = vsel %vm304, %v194, 0
    %v315 = vsel %vm304, %v195, 0
    %v318 = vsel %vm304, %v196, 0
    %v321 = vsel %vm304, %v197, 0
    %v324 = vsel %vm304, %v198, 0
    %v327 = vsel %vm304, %v199, 0
    %v330 = vsel %vm304, %v200, 0
    %v333 = vsel %vm304, %v201, 0
    %v336 = vsel %vm304, %v202, 0
    %v339 = vsel %vm304, %v203, 0
    %v342 = vsel %vm304, %v204, 0
    %v345 = vsel %vm304, %v205, 0
    %v348 = vsel %vm304, %v206, 0
    %v351 = vsel %vm304, %v207, 0
    %353 = vmatprep.subr.mxu0 0.0
    %354 = vmatpush1.msra.mxu0 %v105
    %355 = vmatprep.subr.mxu0 0.0
    %356 = vmatpush1.msra.mxu0 %v106
    %357 = vmatprep.subr.mxu0 0.0
    %358 = vmatpush1.msra.mxu0 0.0
    %359 = vmatprep.subr.mxu0 0.0
    %360 = vmatpush1.msra.mxu0 0.0
    %361 = vmatprep.subr.mxu0 0.0
    %362 = vmatpush1.msra.mxu0 0.0
    %363 = vmatprep.subr.mxu0 0.0
    %364 = vmatpush1.msra.mxu0 0.0
    %365 = vmatprep.subr.mxu0 0.0
    %366 = vmatpush1.msra.mxu0 0.0
    %367 = vmatprep.subr.mxu0 0.0
    %368 = vmatpush1.msra.mxu0 0.0
    %369 = vmatprep.subr.mxu0 0.0
    %370 = vmatpush1.msra.mxu0 0.0
    %371 = vmatprep.subr.mxu0 0.0
    %372 = vmatpush1.msra.mxu0 0.0
    %373 = vmatprep.subr.mxu0 0.0
    %374 = vmatpush1.msra.mxu0 0.0
    %375 = vmatprep.subr.mxu0 0.0
    %376 = vmatpush1.msra.mxu0 0.0
    %377 = vmatprep.subr.mxu0 0.0
    %378 = vmatpush1.msra.mxu0 0.0
    %379 = vmatprep.subr.mxu0 0.0
    %380 = vmatpush1.msra.mxu0 0.0
    %381 = vmatprep.subr.mxu0 0.0
    %382 = vmatpush1.msra.mxu0 0.0
    %383 = vmatprep.subr.mxu0 0.0
    %384 = vmatpush1.msra.mxu0 0.0
    %385 = vmatprep.subr.mxu0 0.0
    %386 = vmatpush1.msra.mxu0 0.0
    %387 = vmatprep.subr.mxu0 0.0
    %388 = vmatpush1.msra.mxu0 0.0
    %389 = vmatprep.subr.mxu0 0.0
    %390 = vmatpush1.msra.mxu0 0.0
    %391 = vmatprep.subr.mxu0 0.0
    %392 = vmatpush1.msra.mxu0 0.0
    %393 = vmatprep.subr.mxu0 0.0
    %394 = vmatpush1.msra.mxu0 0.0
    %395 = vmatprep.subr.mxu0 0.0
    %396 = vmatpush1.msra.mxu0 0.0
    %397 = vmatprep.subr.mxu0 0.0
    %398 = vmatpush1.msra.mxu0 0.0
    %399 = vmatprep.subr.mxu0 0.0
    %400 = vmatpush1.msra.mxu0 0.0
    %401 = vmatprep.subr.mxu0 0.0
    %402 = vmatpush1.msra.mxu0 0.0
    %403 = vmatprep.subr.mxu0 0.0
    %404 = vmatpush1.msra.mxu0 0.0
    %405 = vmatprep.subr.mxu0 0.0
    %406 = vmatpush1.msra.mxu0 0.0
    %407 = vmatprep.subr.mxu0 0.0
    %408 = vmatpush1.msra.mxu0 0.0
    %409 = vmatprep.subr.mxu0 0.0
    %410 = vmatpush1.msra.mxu0 0.0
    %411 = vmatprep.subr.mxu0 0.0
    %412 = vmatpush1.msra.mxu0 0.0
    %413 = vmatprep.subr.mxu0 0.0
    %414 = vmatpush1.msra.mxu0 0.0
    %415 = vmatprep.subr.mxu0 0.0
    %416 = vmatpush1.msra.mxu0 0.0
    %417 = vmatprep.mubr.f32.mxu0 0.0
    %418 = vmatmul.mubr.f32.gmra.mrb[0].mxu0 %v306
    %v419 = vpop.f32.mrb[0].mxu0
    %v420 = vadd.f32 0.0, %v419
    %v421 = vpop.f32.mrb[0].mxu0
    %422 = vmatprep.mubr.f32.mxu0 0.0
    %423 = vmatmul.mubr.f32.gmra.mrb[0].mxu0 %v309
    %v424 = vpop.f32.mrb[0].mxu0
    %v425 = vadd.f32 0.0, %v424
    %v426 = vpop.f32.mrb[0].mxu0
    %427 = vmatprep.mubr.f32.mxu0 0.0
    %428 = vmatmul.mubr.f32.gmra.mrb[0].mxu0 %v312
    %v429 = vpop.f32.mrb[0].mxu0
    %v430 = vadd.f32 0.0, %v429
    %v431 = vpop.f32.mrb[0].mxu0
    %432 = vmatprep.mubr.f32.mxu0 0.0
    %433 = vmatmul.mubr.f32.gmra.mrb[0].mxu0 %v315
    %v434 = vpop.f32.mrb[0].mxu0
    %v435 = vadd.f32 0.0, %v434
    %v436 = vpop.f32.mrb[0].mxu0
    %437 = vmatprep.mubr.f32.mxu0 0.0
    %438 = vmatmul.mubr.f32.gmra.mrb[0].mxu0 %v318
    %v439 = vpop.f32.mrb[0].mxu0
    %v440 = vadd.f32 0.0, %v439
    %v441 = vpop.f32.mrb[0].mxu0
    %442 = vmatprep.mubr.f32.mxu0 0.0
    %443 = vmatmul.mubr.f32.gmra.mrb[0].mxu0 %v321
    %v444 = vpop.f32.mrb[0].mxu0
    %v445 = vadd.f32 0.0, %v444
    %v446 = vpop.f32.mrb[0].mxu0
    %447 = vmatprep.mubr.f32.mxu0 0.0
    %448 = vmatmul.mubr.f32.gmra.mrb[0].mxu0 %v324
    %v449 = vpop.f32.mrb[0].mxu0
    %v450 = vadd.f32 0.0, %v449
    %v451 = vpop.f32.mrb[0].mxu0
    %452 = vmatprep.mubr.f32.mxu0 0.0
    %453 = vmatmul.mubr.f32.gmra.mrb[0].mxu0 %v327
    %v454 = vpop.f32.mrb[0].mxu0
    %v455 = vadd.f32 0.0, %v454
    %v456 = vpop.f32.mrb[0].mxu0
    %457 = vmatprep.mubr.f32.mxu0 0.0
    %458 = vmatmul.mubr.f32.gmra.mrb[0].mxu0 %v330
    %v459 = vpop.f32.mrb[0].mxu0
    %v460 = vadd.f32 0.0, %v459
    %v461 = vpop.f32.mrb[0].mxu0
    %462 = vmatprep.mubr.f32.mxu0 0.0
    %463 = vmatmul.mubr.f32.gmra.mrb[0].mxu0 %v333
    %v464 = vpop.f32.mrb[0].mxu0
    %v465 = vadd.f32 0.0, %v464
    %v466 = vpop.f32.mrb[0].mxu0
    %467 = vmatprep.mubr.f32.mxu0 0.0
    %468 = vmatmul.mubr.f32.gmra.mrb[0].mxu0 %v336
    %v469 = vpop.f32.mrb[0].mxu0
    %v470 = vadd.f32 0.0, %v469
    %v471 = vpop.f32.mrb[0].mxu0
    %472 = vmatprep.mubr.f32.mxu0 0.0
    %473 = vmatmul.mubr.f32.gmra.mrb[0].mxu0 %v339
    %v474 = vpop.f32.mrb[0].mxu0
    %v475 = vadd.f32 0.0, %v474
    %v476 = vpop.f32.mrb[0].mxu0
    %477 = vmatprep.mubr.f32.mxu0 0.0
    %478 = vmatmul.mubr.f32.gmra.mrb[0].mxu0 %v342
    %v479 = vpop.f32.mrb[0].mxu0
    %v480 = vadd.f32 0.0, %v479
    %v481 = vpop.f32.mrb[0].mxu0
    %482 = vmatprep.mubr.f32.mxu0 0.0
    %483 = vmatmul.mubr.f32.gmra.mrb[0].mxu0 %v345
    %v484 = vpop.f32.mrb[0].mxu0
    %v485 = vadd.f32 0.0, %v484
    %v486 = vpop.f32.mrb[0].mxu0
    %487 = vmatprep.mubr.f32.mxu0 0.0
    %488 = vmatmul.mubr.f32.gmra.mrb[0].mxu0 %v348
    %v489 = vpop.f32.mrb[0].mxu0
    %v490 = vadd.f32 0.0, %v489
    %v491 = vpop.f32.mrb[0].mxu0
    %492 = vmatprep.mubr.f32.mxu0 0.0
    %493 = vmatmul.mubr.f32.gmra.mrb[0].mxu0 %v351
    %v494 = vpop.f32.mrb[0].mxu0
    %v495 = vadd.f32 0.0, %v494
    %v496 = vpop.f32.mrb[0].mxu0
    %497 = vdwg.mxu0
    %vm498 = vcmask 195584
    %v500 = vsel %vm498, %v288, 0
    %v503 = vsel %vm498, %v289, 0
    %v506 = vsel %vm498, %v290, 0
    %v509 = vsel %vm498, %v291, 0
    %v512 = vsel %vm498, %v292, 0
    %v515 = vsel %vm498, %v293, 0
    %v518 = vsel %vm498, %v294, 0
    %v521 = vsel %vm498, %v295, 0
    %v524 = vsel %vm498, %v296, 0
    %v527 = vsel %vm498, %v297, 0
    %v530 = vsel %vm498, %v298, 0
    %v533 = vsel %vm498, %v299, 0
    %v536 = vsel %vm498, %v300, 0
    %v539 = vsel %vm498, %v301, 0
    %v542 = vsel %vm498, %v302, 0
    %v545 = vsel %vm498, %v303, 0
    %547 = vmatprep.subr.mxu0 0.0
    %548 = vmatpush1.msra.mxu0 %v107
    %549 = vmatprep.subr.mxu0 0.0
    %550 = vmatpush1.msra.mxu0 %v108
    %551 = vmatprep.subr.mxu0 0.0
    %552 = vmatpush1.msra.mxu0 %v109
    %553 = vmatprep.subr.mxu0 0.0
    %554 = vmatpush1.msra.mxu0 0.0
    %555 = vmatprep.subr.mxu0 0.0
    %556 = vmatpush1.msra.mxu0 0.0
    %557 = vmatprep.subr.mxu0 0.0
    %558 = vmatpush1.msra.mxu0 0.0
    %559 = vmatprep.subr.mxu0 0.0
    %560 = vmatpush1.msra.mxu0 0.0
    %561 = vmatprep.subr.mxu0 0.0
    %562 = vmatpush1.msra.mxu0 0.0
    %563 = vmatprep.subr.mxu0 0.0
    %564 = vmatpush1.msra.mxu0 0.0
    %565 = vmatprep.subr.mxu0 0.0
    %566 = vmatpush1.msra.mxu0 0.0
    %567 = vmatprep.subr.mxu0 0.0
    %568 = vmatpush1.msra.mxu0 0.0
    %569 = vmatprep.subr.mxu0 0.0
    %570 = vmatpush1.msra.mxu0 0.0
    %571 = vmatprep.subr.mxu0 0.0
    %572 = vmatpush1.msra.mxu0 0.0
    %573 = vmatprep.subr.mxu0 0.0
    %574 = vmatpush1.msra.mxu0 0.0
    %575 = vmatprep.subr.mxu0 0.0
    %576 = vmatpush1.msra.mxu0 0.0
    %577 = vmatprep.subr.mxu0 0.0
    %578 = vmatpush1.msra.mxu0 0.0
    %579 = vmatprep.subr.mxu0 0.0
    %580 = vmatpush1.msra.mxu0 0.0
    %581 = vmatprep.subr.mxu0 0.0
    %582 = vmatpush1.msra.mxu0 0.0
    %583 = vmatprep.subr.mxu0 0.0
    %584 = vmatpush1.msra.mxu0 0.0
    %585 = vmatprep.subr.mxu0 0.0
    %586 = vmatpush1.msra.mxu0 0.0
    %587 = vmatprep.subr.mxu0 0.0
    %588 = vmatpush1.msra.mxu0 0.0
    %589 = vmatprep.subr.mxu0 0.0
    %590 = vmatpush1.msra.mxu0 0.0
    %591 = vmatprep.subr.mxu0 0.0
    %592 = vmatpush1.msra.mxu0 0.0
    %593 = vmatprep.subr.mxu0 0.0
    %594 = vmatpush1.msra.mxu0 0.0
    %595 = vmatprep.subr.mxu0 0.0
    %596 = vmatpush1.msra.mxu0 0.0
    %597 = vmatprep.subr.mxu0 0.0
    %598 = vmatpush1.msra.mxu0 0.0
    %599 = vmatprep.subr.mxu0 0.0
    %600 = vmatpush1.msra.mxu0 0.0
    %601 = vmatprep.subr.mxu0 0.0
    %602 = vmatpush1.msra.mxu0 0.0
    %603 = vmatprep.subr.mxu0 0.0
    %604 = vmatpush1.msra.mxu0 0.0
    %605 = vmatprep.subr.mxu0 0.0
    %606 = vmatpush1.msra.mxu0 0.0
    %607 = vmatprep.subr.mxu0 0.0
    %608 = vmatpush1.msra.mxu0 0.0
    %609 = vmatprep.subr.mxu0 0.0
    %610 = vmatpush1.msra.mxu0 0.0
    %611 = vmatprep.mubr.f32.mxu0 0.0
    %612 = vmatmul.mubr.f32.gmra.mrb[0].mxu0 %v500
    %v613 = vpop.f32.mrb[0].mxu0
    %v614 = vadd.f32 0.0, %v613
    %v615 = vpop.f32.mrb[0].mxu0
    %616 = vmatprep.mubr.f32.mxu0 0.0
    %617 = vmatmul.mubr.f32.gmra.mrb[0].mxu0 %v503
    %v618 = vpop.f32.mrb[0].mxu0
    %v619 = vadd.f32 0.0, %v618
    %v620 = vpop.f32.mrb[0].mxu0
    %621 = vmatprep.mubr.f32.mxu0 0.0
    %622 = vmatmul.mubr.f32.gmra.mrb[0].mxu0 %v506
    %v623 = vpop.f32.mrb[0].mxu0
    %v624 = vadd.f32 0.0, %v623
    %v625 = vpop.f32.mrb[0].mxu0
    %626 = vmatprep.mubr.f32.mxu0 0.0
    %627 = vmatmul.mubr.f32.gmra.mrb[0].mxu0 %v509
    %v628 = vpop.f32.mrb[0].mxu0
    %v629 = vadd.f32 0.0, %v628
    %v630 = vpop.f32.mrb[0].mxu0
    %631 = vmatprep.mubr.f32.mxu0 0.0
    %632 = vmatmul.mubr.f32.gmra.mrb[0].mxu0 %v512
    %v633 = vpop.f32.mrb[0].mxu0
    %v634 = vadd.f32 0.0, %v633
    %v635 = vpop.f32.mrb[0].mxu0
    %636 = vmatprep.mubr.f32.mxu0 0.0
    %637 = vmatmul.mubr.f32.gmra.mrb[0].mxu0 %v515
    %v638 = vpop.f32.mrb[0].mxu0
    %v639 = vadd.f32 0.0, %v638
    %v640 = vpop.f32.mrb[0].mxu0
    %641 = vmatprep.mubr.f32.mxu0 0.0
    %642 = vmatmul.mubr.f32.gmra.mrb[0].mxu0 %v518
    %v643 = vpop.f32.mrb[0].mxu0
    %v644 = vadd.f32 0.0, %v643
    %v645 = vpop.f32.mrb[0].mxu0
    %646 = vmatprep.mubr.f32.mxu0 0.0
    %647 = vmatmul.mubr.f32.gmra.mrb[0].mxu0 %v521
    %v648 = vpop.f32.mrb[0].mxu0
    %v649 = vadd.f32 0.0, %v648
    %v650 = vpop.f32.mrb[0].mxu0
    %651 = vmatprep.mubr.f32.mxu0 0.0
    %652 = vmatmul.mubr.f32.gmra.mrb[0].mxu0 %v524
    %v653 = vpop.f32.mrb[0].mxu0
    %v654 = vadd.f32 0.0, %v653
    %v655 = vpop.f32.mrb[0].mxu0
    %656 = vmatprep.mubr.f32.mxu0 0.0
    %657 = vmatmul.mubr.f32.gmra.mrb[0].mxu0 %v527
    %v658 = vpop.f32.mrb[0].mxu0
    %v659 = vadd.f32 0.0, %v658
    %v660 = vpop.f32.mrb[0].mxu0
    %661 = vmatprep.mubr.f32.mxu0 0.0
    %662 = vmatmul.mubr.f32.gmra.mrb[0].mxu0 %v530
    %v663 = vpop.f32.mrb[0].mxu0
    %v664 = vadd.f32 0.0, %v663
    %v665 = vpop.f32.mrb[0].mxu0
    %666 = vmatprep.mubr.f32.mxu0 0.0
    %667 = vmatmul.mubr.f32.gmra.mrb[0].mxu0 %v533
    %v668 = vpop.f32.mrb[0].mxu0
    %v669 = vadd.f32 0.0, %v668
    %v670 = vpop.f32.mrb[0].mxu0
    %671 = vmatprep.mubr.f32.mxu0 0.0
    %672 = vmatmul.mubr.f32.gmra.mrb[0].mxu0 %v536
    %v673 = vpop.f32.mrb[0].mxu0
    %v674 = vadd.f32 0.0, %v673
    %v675 = vpop.f32.mrb[0].mxu0
    %676 = vmatprep.mubr.f32.mxu0 0.0
    %677 = vmatmul.mubr.f32.gmra.mrb[0].mxu0 %v539
    %v678 = vpop.f32.mrb[0].mxu0
    %v679 = vadd.f32 0.0, %v678
    %v680 = vpop.f32.mrb[0].mxu0
    %681 = vmatprep.mubr.f32.mxu0 0.0
    %682 = vmatmul.mubr.f32.gmra.mrb[0].mxu0 %v542
    %v683 = vpop.f32.mrb[0].mxu0
    %v684 = vadd.f32 0.0, %v683
    %v685 = vpop.f32.mrb[0].mxu0
    %686 = vmatprep.mubr.f32.mxu0 0.0
    %687 = vmatmul.mubr.f32.gmra.mrb[0].mxu0 %v545
    %v688 = vpop.f32.mrb[0].mxu0
    %v689 = vadd.f32 0.0, %v688
    %v690 = vpop.f32.mrb[0].mxu0
    %691 = vdwg.mxu0
    %v692 = vmul.f32 %v420, %v614
    %v693 = vmul.f32 %v425, %v619
    %v694 = vmul.f32 %v430, %v624
    %v695 = vmul.f32 %v435, %v629
    %v696 = vmul.f32 %v440, %v634
    %v697 = vmul.f32 %v445, %v639
    %v698 = vmul.f32 %v450, %v644
    %v699 = vmul.f32 %v455, %v649
    %v700 = vmul.f32 %v460, %v654
    %v701 = vmul.f32 %v465, %v659
    %v702 = vmul.f32 %v470, %v664
    %v703 = vmul.f32 %v475, %v669
    %v704 = vmul.f32 %v480, %v674
    %v705 = vmul.f32 %v485, %v679
    %v706 = vmul.f32 %v490, %v684
    %v707 = vmul.f32 %v495, %v689
    %vm708 = vcmask 261120
    %v709 = vsel %vm708, %v692, 0.0
    %710 = vadd.xlane.f32.xlu0 %v709
    %v711 = vpop.xlane.xlu0 %710
    %v712 = vsel %vm708, %v693, 0.0
    %713 = vadd.xlane.f32.xlu0 %v712
    %v714 = vpop.xlane.xlu0 %713
    %v715 = vsel %vm708, %v694, 0.0
    %716 = vadd.xlane.f32.xlu0 %v715
    %v717 = vpop.xlane.xlu0 %716
    %v718 = vsel %vm708, %v695, 0.0
    %719 = vadd.xlane.f32.xlu0 %v718
    %v720 = vpop.xlane.xlu0 %719
    %v721 = vsel %vm708, %v696, 0.0
    %722 = vadd.xlane.f32.xlu0 %v721
    %v723 = vpop.xlane.xlu0 %722
    %v724 = vsel %vm708, %v697, 0.0
    %725 = vadd.xlane.f32.xlu0 %v724
    %v726 = vpop.xlane.xlu0 %725
    %v727 = vsel %vm708, %v698, 0.0
    %728 = vadd.xlane.f32.xlu0 %v727
    %v729 = vpop.xlane.xlu0 %728
    %v730 = vsel %vm708, %v699, 0.0
    %731 = vadd.xlane.f32.xlu0 %v730
    %v732 = vpop.xlane.xlu0 %731
    %v733 = vsel %vm708, %v700, 0.0
    %734 = vadd.xlane.f32.xlu0 %v733
    %v735 = vpop.xlane.xlu0 %734
    %v736 = vsel %vm708, %v701, 0.0
    %737 = vadd.xlane.f32.xlu0 %v736
    %v738 = vpop.xlane.xlu0 %737
    %v739 = vsel %vm708, %v702, 0.0
    %740 = vadd.xlane.f32.xlu0 %v739
    %v741 = vpop.xlane.xlu0 %740
    %v742 = vsel %vm708, %v703, 0.0
    %743 = vadd.xlane.f32.xlu0 %v742
    %v744 = vpop.xlane.xlu0 %743
    %v745 = vsel %vm708, %v704, 0.0
    %746 = vadd.xlane.f32.xlu0 %v745
    %v747 = vpop.xlane.xlu0 %746
    %v748 = vsel %vm708, %v705, 0.0
    %749 = vadd.xlane.f32.xlu0 %v748
    %v750 = vpop.xlane.xlu0 %749
    %v751 = vsel %vm708, %v706, 0.0
    %752 = vadd.xlane.f32.xlu0 %v751
    %v753 = vpop.xlane.xlu0 %752
    %v754 = vsel %vm708, %v707, 0.0
    %755 = vadd.xlane.f32.xlu0 %v754
    %v756 = vpop.xlane.xlu0 %755
    %v757 = vsub.f32 0.0, %v711
    %v758 = vsub.f32 0.0, %v714
    %v759 = vsub.f32 0.0, %v717
    %v760 = vsub.f32 0.0, %v720
    %v761 = vsub.f32 0.0, %v723
    %v762 = vsub.f32 0.0, %v726
    %v763 = vsub.f32 0.0, %v729
    %v764 = vsub.f32 0.0, %v732
    %v765 = vsub.f32 0.0, %v735
    %v766 = vsub.f32 0.0, %v738
    %v767 = vsub.f32 0.0, %v741
    %v768 = vsub.f32 0.0, %v744
    %v769 = vsub.f32 0.0, %v747
    %v770 = vsub.f32 0.0, %v750
    %v771 = vsub.f32 0.0, %v753
    %v772 = vsub.f32 0.0, %v756
    %v773 = vmul.f32 %v757, 1.442695
    %v774 = vpow.pop %v773
    %v775 = vmul.f32 %v758, 1.442695
    %v776 = vpow.pop %v775
    %v777 = vmul.f32 %v759, 1.442695
    %v778 = vpow.pop %v777
    %v779 = vmul.f32 %v760, 1.442695
    %v780 = vpow.pop %v779
    %v781 = vmul.f32 %v761, 1.442695
    %v782 = vpow.pop %v781
    %v783 = vmul.f32 %v762, 1.442695
    %v784 = vpow.pop %v783
    %v785 = vmul.f32 %v763, 1.442695
    %v786 = vpow.pop %v785
    %v787 = vmul.f32 %v764, 1.442695
    %v788 = vpow.pop %v787
    %v789 = vmul.f32 %v765, 1.442695
    %v790 = vpow.pop %v789
    %v791 = vmul.f32 %v766, 1.442695
    %v792 = vpow.pop %v791
    %v793 = vmul.f32 %v767, 1.442695
    %v794 = vpow.pop %v793
    %v795 = vmul.f32 %v768, 1.442695
    %v796 = vpow.pop %v795
    %v797 = vmul.f32 %v769, 1.442695
    %v798 = vpow.pop %v797
    %v799 = vmul.f32 %v770, 1.442695
    %v800 = vpow.pop %v799
    %v801 = vmul.f32 %v771, 1.442695
    %v802 = vpow.pop %v801
    %v803 = vmul.f32 %v772, 1.442695
    %v804 = vpow.pop %v803
    %v805 = vadd.f32 %v774, 1.0
    %v806 = vadd.f32 %v776, 1.0
    %v807 = vadd.f32 %v778, 1.0
    %v808 = vadd.f32 %v780, 1.0
    %v809 = vadd.f32 %v782, 1.0
    %v810 = vadd.f32 %v784, 1.0
    %v811 = vadd.f32 %v786, 1.0
    %v812 = vadd.f32 %v788, 1.0
    %v813 = vadd.f32 %v790, 1.0
    %v814 = vadd.f32 %v792, 1.0
    %v815 = vadd.f32 %v794, 1.0
    %v816 = vadd.f32 %v796, 1.0
    %v817 = vadd.f32 %v798, 1.0
    %v818 = vadd.f32 %v800, 1.0
    %v819 = vadd.f32 %v802, 1.0
    %v820 = vadd.f32 %v804, 1.0
    %v821 = vrcp.pop %v805
    %v822 = vrcp.pop %v806
    %v823 = vrcp.pop %v807
    %v824 = vrcp.pop %v808
    %v825 = vrcp.pop %v809
    %v826 = vrcp.pop %v810
    %v827 = vrcp.pop %v811
    %v828 = vrcp.pop %v812
    %v829 = vrcp.pop %v813
    %v830 = vrcp.pop %v814
    %v831 = vrcp.pop %v815
    %v832 = vrcp.pop %v816
    %v833 = vrcp.pop %v817
    %v834 = vrcp.pop %v818
    %v835 = vrcp.pop %v819
    %v836 = vrcp.pop %v820
    %v853 = vlaneseq
    %v854 = vshrl.u32 %v853, 7
    %v855 = vsub.s32 %v111, %v854
    %v856 = vrot.slane %v821, %v855
    %v857 = vadd.s32 %v111, 4294967288
    %v858 = vlaneseq
    %v859 = vshrl.u32 %v858, 7
    %v860 = vsub.s32 %v857, %v859
    %v861 = vrot.slane %v822, %v860
    %vm862 = vcmask 130112
    %v863 = vsel %vm862, %v861, %v856
    %v864 = vadd.s32 %v111, 4294967280
    %v865 = vlaneseq
    %v866 = vshrl.u32 %v865, 7
    %v867 = vsub.s32 %v864, %v866
    %v868 = vrot.slane %v823, %v867
    %vm869 = vcmask 195712
    %v870 = vsel %vm869, %v868, %v863
    %v871 = vadd.s32 %v111, 4294967272
    %v872 = vlaneseq
    %v873 = vshrl.u32 %v872, 7
    %v874 = vsub.s32 %v871, %v873
    %v875 = vrot.slane %v824, %v874
    %vm876 = vcmask 261312
    %v877 = vsel %vm876, %v875, %v870
    %v878 = vadd.s32 %v111, 4294967264
    %v879 = vlaneseq
    %v880 = vshrl.u32 %v879, 7
    %v881 = vsub.s32 %v878, %v880
    %v882 = vrot.slane %v825, %v881
    %vm883 = vcmask 326912
    %v884 = vsel %vm883, %v882, %v877
    %v885 = vadd.s32 %v111, 4294967256
    %v886 = vlaneseq
    %v887 = vshrl.u32 %v886, 7
    %v888 = vsub.s32 %v885, %v887
    %v889 = vrot.slane %v826, %v888
    %vm890 = vcmask 392512
    %v891 = vsel %vm890, %v889, %v884
    %v892 = vadd.s32 %v111, 4294967248
    %v893 = vlaneseq
    %v894 = vshrl.u32 %v893, 7
    %v895 = vsub.s32 %v892, %v894
    %v896 = vrot.slane %v827, %v895
    %vm897 = vcmask 458112
    %v898 = vsel %vm897, %v896, %v891
    %v899 = vadd.s32 %v111, 4294967240
    %v900 = vlaneseq
    %v901 = vshrl.u32 %v900, 7
    %v902 = vsub.s32 %v899, %v901
    %v903 = vrot.slane %v828, %v902
    %vm904 = vcmask 523712
    %v905 = vsel %vm904, %v903, %v898
    %v906 = vadd.s32 %v111, 4294967232
    %v907 = vlaneseq
    %v908 = vshrl.u32 %v907, 7
    %v909 = vsub.s32 %v906, %v908
    %v910 = vrot.slane %v829, %v909
    %vm911 = vcmask 589312
    %v912 = vsel %vm911, %v910, %v905
    %v913 = vadd.s32 %v111, 4294967224
    %v914 = vlaneseq
    %v915 = vshrl.u32 %v914, 7
    %v916 = vsub.s32 %v913, %v915
    %v917 = vrot.slane %v830, %v916
    %vm918 = vcmask 654912
    %v919 = vsel %vm918, %v917, %v912
    %v920 = vadd.s32 %v111, 4294967216
    %v921 = vlaneseq
    %v922 = vshrl.u32 %v921, 7
    %v923 = vsub.s32 %v920, %v922
    %v924 = vrot.slane %v831, %v923
    %vm925 = vcmask 720512
    %v926 = vsel %vm925, %v924, %v919
    %v927 = vadd.s32 %v111, 4294967208
    %v928 = vlaneseq
    %v929 = vshrl.u32 %v928, 7
    %v930 = vsub.s32 %v927, %v929
    %v931 = vrot.slane %v832, %v930
    %vm932 = vcmask 786112
    %v933 = vsel %vm932, %v931, %v926
    %v934 = vadd.s32 %v111, 4294967200
    %v935 = vlaneseq
    %v936 = vshrl.u32 %v935, 7
    %v937 = vsub.s32 %v934, %v936
    %v938 = vrot.slane %v833, %v937
    %vm939 = vcmask 851712
    %v940 = vsel %vm939, %v938, %v933
    %v941 = vadd.s32 %v111, 4294967192
    %v942 = vlaneseq
    %v943 = vshrl.u32 %v942, 7
    %v944 = vsub.s32 %v941, %v943
    %v945 = vrot.slane %v834, %v944
    %vm946 = vcmask 917312
    %v947 = vsel %vm946, %v945, %v940
    %v948 = vadd.s32 %v111, 4294967184
    %v949 = vlaneseq
    %v950 = vshrl.u32 %v949, 7
    %v951 = vsub.s32 %v948, %v950
    %v952 = vrot.slane %v835, %v951
    %vm953 = vcmask 982912
    %v954 = vsel %vm953, %v952, %v947
    %v955 = vadd.s32 %v111, 4294967176
    %v956 = vlaneseq
    %v957 = vshrl.u32 %v956, 7
    %v958 = vsub.s32 %v955, %v957
    %v959 = vrot.slane %v836, %v958
    %vm960 = vcmask 1048512
    %v961 = vsel %vm960, %v959, %v954
    %963 = vst [vmem:[#allocation10] sm:$0x1] %v961
    // Predicated region
    $region34: #{tpu_custom_call.1} parent=1 // pred_check
      _
    $region35: #{tpu_custom_call.1} parent=1 // pred_check_branch
      %965 = sbr.rel (0) target = $region37
    $region36: #{tpu_custom_call.1} parent=1 // pred_region
      %s967 = ssub.s32 16, 16
      %968 = vsyncadd [#allocation4], %s967
      %s970 = sshll.u32 [#allocation10], 4
      %s971 = int_to_ptr.vmem [resolvable:$true] %s970
      %973 = dma.vmem_to_hbm [thread:$0]  %s971, 16, %s4, [#allocation4]
    $region37: #{tpu_custom_call.1} parent=1 // pred_fallthru
      _
    // Predicated region
    $region38: #{tpu_custom_call.1} parent=1 // pred_check
      _
    $region39: #{tpu_custom_call.1} parent=1 // pred_check_branch
      %975 = sbr.rel (0) target = $region41
    $region40: #{tpu_custom_call.1} parent=1 // pred_region
      %976 = dma.done [#allocation4], 16
    $region41: #{tpu_custom_call.1} parent=1 // pred_fallthru
      _
    %977 = vsyncpa [#allocation3], 1
    %978 = vsyncpa [#allocation6], 1
    %979 = vsyncpa [#allocation9], 1
    %980 = vsyncpa [#allocation4], 1

</llo_original>
